<compile_context>
chip_gen: v5e
topology: v5e:2x2
jax: 0.10.0
libtpu: 0.0.40
codegen_flags: <defaults>
</compile_context>

<pallas_src>
import numpy as np
import jax
import jax.numpy as jnp
from jax.experimental import pallas as pl
from jax.experimental.pallas import tpu as pltpu

LOGIT_TEMP = 0.1
INV_LOGIT_TEMP = 1.0 / LOGIT_TEMP
EPS = 1e-8

TM_TARGET = 1024         # row tile for the linear kernel (HBM-bound -> big tiles)
TN_TARGET = 512          # frame tile for the logits kernel
LANE = 128


def _round_up(n, m):
    return ((n + m - 1) // m) * m


def _vmem_limit_bytes():
    """Generation-aware scoped-VMEM budget; both kernels need <~16 MiB."""
    try:
        cap = int(pltpu.get_tpu_info().vmem_capacity_bytes)
    except Exception:
        cap = 64 * 1024 * 1024          # v7x per-TensorCore VMEM (smallest generation)
    return int(min(cap // 2, 32 * 1024 * 1024))


def _pick_tile(n, target, min_steps=2):
    """Pick (tile, padded_n): tile is a multiple of 8, padded_n % tile == 0.
    Keeps >= min_steps grid steps whenever possible so dimension_semantics
    ("parallel",) can shard the grid across both TensorCores on v7x; the extra
    grid step is ~0.35 us and negligible on single-core v5e/v6e."""
    n8 = _round_up(max(n, 1), 8)
    tile = min(target, n8)
    while tile > 8 and -(-n8 // tile) < min_steps:
        tile = _round_up(tile // 2, 8)
    return tile, _round_up(n8, tile)


# ---------------------------------------------------------------- kernel 1: Linear
def _linear_kernel(x_ref, w_ref, b_ref, o_ref):
    # bf16 operands, f32 accumulation on the MXU; bias add in f32, bf16 store.
    acc = jnp.dot(x_ref[...], w_ref[...], preferred_element_type=jnp.float32)
    o_ref[...] = (acc + b_ref[...]).astype(o_ref.dtype)


def final_proj(x2d, w_bf16, b):
    M, E = x2d.shape
    F = w_bf16.shape[1]
    tm, m_pad = _pick_tile(M, TM_TARGET)

    # NOTE: activations/weights/outputs are bf16 (f32 MXU accumulation) — intentional
    # precision tradeoff vs. the torch f32 nn.Linear reference.
    xb = x2d.astype(jnp.bfloat16)
    if m_pad != M:
        xb = jnp.pad(xb, ((0, m_pad - M), (0, 0)))

    out = pl.pallas_call(
        _linear_kernel,
        out_shape=jax.ShapeDtypeStruct((m_pad, F), jnp.bfloat16),
        grid=(m_pad // tm,),
        in_specs=[
            pl.BlockSpec((tm, E), lambda i: (i, 0)),   # streamed rows
            pl.BlockSpec((E, F), lambda i: (0, 0)),    # resident weight
            pl.BlockSpec((1, F), lambda i: (0, 0)),    # resident bias
        ],
        out_specs=pl.BlockSpec((tm, F), lambda i: (i, 0)),
        compiler_params=pltpu.CompilerParams(
            dimension_semantics=("parallel",),
            vmem_limit_bytes=_vmem_limit_bytes(),
        ),
    )(xb, w_bf16, b)
    return out[:M]


# ------------------------------------------------------ kernel 2: _compute_logits
def _logits_body(proj_ref, lab_ref, emb_ref, eq_ref, out_ref):
    x = proj_ref[...].astype(jnp.float32)    # [tn, D] (bf16 stream, f32 for the norm)
    lab = lab_ref[...]                       # [tn, 1] int32 class ids (unshifted)
    emb = emb_ref[...]                       # [Cp, D] bf16, normalized, shifted by one row

    # frame normalization: rsqrt on the clamped sum-of-squares (EUP slot), then mul.
    ss = jnp.sum(x * x, axis=-1, keepdims=True)
    xh = (x * jax.lax.rsqrt(jnp.maximum(ss, EPS * EPS))).astype(jnp.bfloat16)

    # cosine similarity of each frame against every class row (bf16 MXU, f32 acc).
    # column j >= 1 corresponds to class j-1; column 0 / padded columns give 0.
    sims = jax.lax.dot_general(
        xh, emb, (((1,), (1,)), ((), ())),
        preferred_element_type=jnp.float32)                     # [tn, Cp]

    col = jax.lax.broadcasted_iota(jnp.int32, sims.shape, 1)
    onehot = (lab + 1) == col                                    # target class column

    # positive logit = similarity with the target class embedding
    pos = jnp.sum(jnp.where(onehot, sims, 0.0), axis=-1, keepdims=True)   # [tn, 1]

    if eq_ref is None:
        # no duplicate embeddings: only the target-class column is "negative == positive"
        nip = onehot
    else:
        # duplicates exist: neg_is_pos = onehot @ eq > 0.5 (bf16 MXU, exact 0/1 values)
        onehot_bf = jnp.where(onehot, 1.0, 0.0).astype(jnp.bfloat16)
        nip = jax.lax.dot_general(
            onehot_bf, eq_ref[...], (((1,), (0,)), ((), ())),
            preferred_element_type=jnp.float32) > 0.5

    neg = jnp.where(nip, -jnp.inf, sims * INV_LOGIT_TEMP)
    lane0 = col == 0
    # single lane-dense store: lane 0 = positive logit, lanes 1..C = negatives.
    out_ref[...] = jnp.where(lane0, pos * INV_LOGIT_TEMP, neg).astype(out_ref.dtype)


def _logits_kernel_nodup(proj_ref, lab_ref, emb_ref, out_ref):
    _logits_body(proj_ref, lab_ref, emb_ref, None, out_ref)


def _logits_kernel_dup(proj_ref, lab_ref, emb_ref, eq_ref, out_ref):
    _logits_body(proj_ref, lab_ref, emb_ref, eq_ref, out_ref)


def compute_logits(proj_sel, labels_sel, emb_tab_bf16, eq, num_classes):
    N, D = proj_sel.shape
    Cp = emb_tab_bf16.shape[0]
    tn, n_pad = _pick_tile(N, TN_TARGET)

    proj = proj_sel.astype(jnp.bfloat16)
    if n_pad != N:
        proj = jnp.pad(proj, ((0, n_pad - N), (0, 0)))
        labels_sel = jnp.pad(labels_sel, (0, n_pad - N))
    # labels assumed in [0, num_classes); out-of-range labels would silently give pos=0.
    lab2d = labels_sel.astype(jnp.int32).reshape(n_pad, 1)

    in_specs = [
        pl.BlockSpec((tn, D), lambda i: (i, 0)),   # streamed bf16 frames
        pl.BlockSpec((tn, 1), lambda i: (i, 0)),   # streamed labels
        pl.BlockSpec((Cp, D), lambda i: (0, 0)),   # resident normalized class table
    ]
    args = [proj, lab2d, emb_tab_bf16]
    if eq is not None:
        in_specs.append(pl.BlockSpec((Cp, Cp), lambda i: (0, 0)))   # resident bf16 eq table
        args.append(eq)
        kernel = _logits_kernel_dup
    else:
        kernel = _logits_kernel_nodup

    out = pl.pallas_call(
        kernel,
        out_shape=jax.ShapeDtypeStruct((n_pad, Cp), jnp.float32),
        grid=(n_pad // tn,),
        in_specs=in_specs,
        out_specs=pl.BlockSpec((tn, Cp), lambda i: (i, 0)),
        compiler_params=pltpu.CompilerParams(
            dimension_semantics=("parallel",),
            vmem_limit_bytes=_vmem_limit_bytes(),
        ),
    )(*args)

    # drop padded frames / padded class lanes (XLA slice; no concat of the big array).
    return out[:N, :num_classes + 1]


# ---------------------------------------------------------------- parameter glue
def _exact_eq_table(emb, chunk=64):
    """Class-vs-class exact float-equality table (bool [C, C]), chunked over rows so
    no [C, C, D] intermediate is materialized.  Runs once at init."""
    C = emb.shape[0]
    rows = []
    for s in range(0, C, chunk):
        e = emb[s:s + chunk]
        rows.append(jnp.all(e[:, None, :] == emb[None, :, :], axis=-1))
    return jnp.concatenate(rows, axis=0)


# ---------------------------------------------------------------- module wrapper
class LogitGenerator:
    def __init__(self, encoder_embed_dim, num_classes, final_dim,
                 skip_masked=False, skip_nomask=False, seed=0):
        k1, k2, k3 = jax.random.split(jax.random.PRNGKey(seed), 3)
        # torch.nn.init.uniform_  -> U[0, 1)
        emb = jax.random.uniform(k1, (num_classes, final_dim), jnp.float32)
        self.label_embeddings = emb
        # torch Linear default init: U(-1/sqrt(fan_in), 1/sqrt(fan_in))
        bound = 1.0 / float(np.sqrt(encoder_embed_dim))
        self.w_bf16 = jax.random.uniform(
            k2, (encoder_embed_dim, final_dim), jnp.float32, -bound, bound
        ).astype(jnp.bfloat16)
        self.b = jax.random.uniform(
            k3, (final_dim,), jnp.float32, -bound, bound).reshape(1, final_dim)

        self.num_classes = num_classes
        self.cpad = _round_up(num_classes + 1, LANE)

        # pre-normalize embeddings once (matches torch cosine_similarity eps clamping),
        # pad class dim to a lane-dense multiple of 128, and shift by one row so the
        # kernel writes the positive logit directly into lane 0 of its output block.
        ss = jnp.sum(emb * emb, axis=-1, keepdims=True)
        emb_n = (emb * jax.lax.rsqrt(jnp.maximum(ss, EPS * EPS))).astype(jnp.bfloat16)
        tab = jnp.zeros((self.cpad, final_dim), jnp.bfloat16)
        self.emb_tab_bf16 = tab.at[1:num_classes + 1].set(emb_n)

        # exact-equality table + duplicate flag, computed once at init; shipped to the
        # kernel (bf16, values exactly 0/1) only when duplicates actually exist.
        eq_real = _exact_eq_table(emb)
        self.any_dup = bool(jnp.sum(eq_real) > num_classes)
        if self.any_dup:
            eq_pad = jnp.zeros((self.cpad, self.cpad), jnp.bfloat16)
            self.eq = eq_pad.at[1:num_classes + 1, 1:num_classes + 1].set(
                eq_real.astype(jnp.bfloat16))
        else:
            self.eq = None

        self.skip_masked = skip_masked
        self.skip_nomask = skip_nomask

    def __call__(self, x, label, mask_m, mask_u):
        B, T, E = x.shape
        F = self.w_bf16.shape[1]
        proj = final_proj(x.reshape(B * T, E), self.w_bf16, self.b).reshape(B, T, F)

        label_np = np.asarray(label)
        C = self.num_classes

        def sel_and_logits(mask_np):
            # TODO(synk): dynamic-shape boolean frame selection stays as host glue;
            # the selected count is padded to fixed 8-aligned buckets inside
            # compute_logits to keep Pallas shapes static.
            bidx, tidx = np.nonzero(mask_np)
            if bidx.shape[0] == 0:
                return jnp.zeros((0, C + 1), jnp.float32)
            proj_sel = proj[bidx, tidx]                            # [N, F] bf16
            lab_sel = jnp.asarray(label_np[bidx, tidx], dtype=jnp.int32)
            return compute_logits(proj_sel, lab_sel, self.emb_tab_bf16, self.eq, C)

        logit_m = None if self.skip_masked else sel_and_logits(np.asarray(mask_m))
        logit_u = None if self.skip_nomask else sel_and_logits(np.asarray(mask_u))
        return logit_m, logit_u


if __name__ == "__main__":
    B, T, E, F, C = 2, 8, 32, 16, 10
    x = jax.random.normal(jax.random.PRNGKey(0), (B, T, E), jnp.float32)

    rng = np.random.RandomState(0)
    label = jnp.asarray(rng.randint(0, C, size=(B, T)), dtype=jnp.int32)

    mask_m = np.zeros((B, T), dtype=bool)
    mask_m[:, ::2] = True            # 8 masked frames
    mask_u = ~mask_m                 # 8 unmasked frames

    model = LogitGenerator(E, C, F, seed=0)
    logit_m, logit_u = model(x, label, mask_m, mask_u)
    jax.block_until_ready((logit_m, logit_u))

    assert logit_m.shape == (int(mask_m.sum()), C + 1)
    assert logit_u.shape == (int(mask_u.sum()), C + 1)
    assert bool(jnp.all(jnp.isfinite(logit_m[:, 0])))     # positive logits are finite
    assert bool(jnp.all(jnp.isfinite(logit_u[:, 0])))
    # the negative column of the target class is always -inf (neg_is_pos for itself)
    lab_m = np.asarray(label)[np.nonzero(mask_m)]
    rows = np.arange(lab_m.shape[0])
    assert bool(jnp.all(jnp.isneginf(logit_m[rows, lab_m + 1])))

    # exercise the duplicate-embedding kernel variant (bf16 onehot @ eq path)
    emb_dup_np = np.array(jax.random.uniform(jax.random.PRNGKey(1), (C, F), jnp.float32))
    emb_dup_np[7] = emb_dup_np[3]            # classes 3 and 7 share one embedding
    emb_dup = jnp.asarray(emb_dup_np)
    ssd = jnp.sum(emb_dup * emb_dup, axis=-1, keepdims=True)
    emb_dn = (emb_dup * jax.lax.rsqrt(jnp.maximum(ssd, EPS * EPS))).astype(jnp.bfloat16)
    Cp = _round_up(C + 1, LANE)
    tab_d = jnp.zeros((Cp, F), jnp.bfloat16).at[1:C + 1].set(emb_dn)
    eq_d = jnp.zeros((Cp, Cp), jnp.bfloat16).at[1:C + 1, 1:C + 1].set(
        _exact_eq_table(emb_dup).astype(jnp.bfloat16))
    proj_d = jax.random.normal(jax.random.PRNGKey(2), (8, F), jnp.float32).astype(jnp.bfloat16)
    lab_d = jnp.full((8,), 3, jnp.int32)
    lg_d = compute_logits(proj_d, lab_d, tab_d, eq_d, C)
    jax.block_until_ready(lg_d)
    assert lg_d.shape == (8, C + 1)
    assert bool(jnp.all(jnp.isneginf(lg_d[:, 4])))        # class 3 column masked
    assert bool(jnp.all(jnp.isneginf(lg_d[:, 8])))        # duplicate class 7 column masked
    assert bool(jnp.all(jnp.isfinite(lg_d[:, 0])))

    print("KERNEL_OK")
</pallas_src>

<mosaic_0001>
module attributes {stable_mosaic.version = 11 : i64} {
  func.func @_linear_kernel(%arg0: i32, %arg1: memref<8x32xbf16, #tpu.memory_space<vmem>>, %arg2: memref<32x16xbf16, #tpu.memory_space<vmem>>, %arg3: memref<1x16xf32, #tpu.memory_space<vmem>>, %arg4: memref<8x16xbf16, #tpu.memory_space<vmem>>) attributes {dimension_semantics = [#tpu.dimension_semantics<parallel>], iteration_bounds = array<i64: 2>, scalar_prefetch = 0 : i64, scratch_operands = 0 : i64, tpu.core_type = #tpu.core_type<tc>, window_params = [{transform_indices = @transform_0, window_bounds = array<i64: 8, 32>}, {pipeline_mode = #tpu.pipeline_mode<synchronous>, transform_indices = @transform_1, window_bounds = array<i64: 32, 16>}, {pipeline_mode = #tpu.pipeline_mode<synchronous>, transform_indices = @transform_2, window_bounds = array<i64: 1, 16>}, {transform_indices = @transform_3, window_bounds = array<i64: 8, 16>}]} {
    %c0 = arith.constant 0 : index
    %c0_0 = arith.constant 0 : index
    %0 = vector.load %arg1[%c0, %c0_0] : memref<8x32xbf16, #tpu.memory_space<vmem>>, vector<8x32xbf16>
    %c0_1 = arith.constant 0 : index
    %c0_2 = arith.constant 0 : index
    %1 = vector.load %arg2[%c0_1, %c0_2] : memref<32x16xbf16, #tpu.memory_space<vmem>>, vector<32x16xbf16>
    %cst = arith.constant dense<0.000000e+00> : vector<8x16xf32>
    %2 = tpu.matmul %0, %1, %cst {dimension_numbers = #tpu.dot_dimension_numbers<[1], [0], [0], [1], [0, 0, 1, 1], [], []>} : vector<8x32xbf16>, vector<32x16xbf16>, vector<8x16xf32> -> vector<8x16xf32>
    %c0_3 = arith.constant 0 : index
    %c0_4 = arith.constant 0 : index
    %3 = vector.load %arg3[%c0_3, %c0_4] : memref<1x16xf32, #tpu.memory_space<vmem>>, vector<1x16xf32>
    %4 = vector.broadcast %3 : vector<1x16xf32> to vector<8x16xf32>
    %5 = arith.addf %2, %4 : vector<8x16xf32>
    %6 = arith.truncf %5 : vector<8x16xf32> to vector<8x16xbf16>
    %c0_5 = arith.constant 0 : index
    %c0_6 = arith.constant 0 : index
    %7 = vector.load %arg4[%c0_5, %c0_6] : memref<8x16xbf16, #tpu.memory_space<vmem>>, vector<8x16xbf16>
    tpu.vector_store %arg4[%c0_5, %c0_6], %6 {strides = array<i32>} : memref<8x16xbf16, #tpu.memory_space<vmem>>, vector<8x16xbf16>,
    return
  }
  func.func @transform_0(%arg0: i32) -> (i32, i32) {
    %c0_i32 = arith.constant 0 : i32
    %c0_i32_0 = arith.constant 0 : i32
    return %arg0, %c0_i32 : i32, i32
  }
  func.func @transform_1(%arg0: i32) -> (i32, i32) {
    %c0_i32 = arith.constant 0 : i32
    %c0_i32_0 = arith.constant 0 : i32
    %c0_i32_1 = arith.constant 0 : i32
    return %c0_i32, %c0_i32_0 : i32, i32
  }
  func.func @transform_2(%arg0: i32) -> (i32, i32) {
    %c0_i32 = arith.constant 0 : i32
    %c0_i32_0 = arith.constant 0 : i32
    %c0_i32_1 = arith.constant 0 : i32
    return %c0_i32, %c0_i32_0 : i32, i32
  }
  func.func @transform_3(%arg0: i32) -> (i32, i32) {
    %c0_i32 = arith.constant 0 : i32
    %c0_i32_0 = arith.constant 0 : i32
    return %arg0, %c0_i32 : i32, i32
  }
}

</mosaic_0001>

<llo_original>
// kernel: tpu_custom_call.1
$region0: #{tpu_custom_call.1}
  #allocation0 [shape = 'u32[]', space=smem, size = 0x4, offset = 0x4, fixed_abs, tag = 'smem constant byte address 0x4 - core index']
  #allocation1 [shape = 'u32[72,128]{1,0:T(1,128)}', space=vmem, size = 0x9000, scoped, tag = 'internal scratch']
  %s0 = inlined_call_operand.vmem [shape: bf16[16,32], index: 0, kind: input, shape index: {}]
  %s1 = inlined_call_operand.vmem [shape: bf16[32,16], index: 1, kind: input, shape index: {}]
  %s2 = inlined_call_operand.vmem [shape: f32[1,16], index: 2, kind: input, shape index: {}]
  %s3 = inlined_call_operand.hbm [shape: bf16[16,16], index: 3, kind: output, shape index: {}]
  %s4 = sld [smem:[#allocation0]]
  $region45: #{tpu_custom_call.1} parent=0
    _
  %s6 = ssub.s32 1, %s4
  %s7 = scalar_select 0, %s6, %s4
  $region1: #{tpu_custom_call.1} parent=0
    #allocation2 [shape = 'u8[4096]{0}', space=vmem, size = 0x1000, scoped, tag = 'output window, operand 0']
    #allocation3 [shape = 's32[2]{0}', space=sflag, size = 0x8, scoped, tag = 'scoped memory for tpu_custom_call.1']
    %8 = vsyncpa [#allocation3], 0
    %s9 = scalar_lea.sflag [#allocation3], 1
    %10 = vsyncpa %s9, 0
    loop: start=0, step=1, limit=4
    $region2: #{tpu_custom_call.1} parent=1 // loop_pre_header
      _
    $region3: #{tpu_custom_call.1} parent=1 // loop_header
      %s12 = sphi 0, %s16
      %p13 = scmp.ge.s32.totalorder %s12, 4
      %s22 = sphi 0, %s24
      %s25 = sphi 0, %s22
      %s26 = sphi 0, %s25
      %s42 = sphi 0, %s26
      %s46 = sphi 0, %s46
      %s48 = sphi 0, %s46
      %s49 = sphi 0, %s48
      %s63 = sphi 0, %s49
      %s67 = sphi 0, %s67
      %s69 = sphi 0, %s67
      %s70 = sphi 0, %s69
      %s84 = sphi 0, %s70
      %s90 = sphi 0, %s92
      %s93 = sphi 0, %s90
      %s94 = sphi 0, %s93
      %s110 = sphi 0, %s94
    $region4: #{tpu_custom_call.1} parent=1 // loop_header_branch
      %15 = sbr.rel (%p13) target = $region8
    $region5: #{tpu_custom_call.1} parent=1 // loop_body
      %s17 = ssub.s32 %s12, 1
      %s18 = ssub.s32 %s12, 2
      %s19 = sadd.s32 %s12, 1
      %s20 = ssub.s32 %s12, %s19
      %p21 = scmp.eq.s32.totalorder %s20, 0
      %s23 = sadd.s32 %s22, 1
      %s24 = scalar_select %p21, %s22, %s23
      %p27 = pneg %p21
      %p28 = scmp.eq.s32.totalorder %s12, 1
      %p29 = por %p27, %p28
      %p30 = scmp.ne.s32.totalorder %s22, %s25
      %p31 = scmp.eq.s32.totalorder %s12, 0
      %p32 = por %p30, %p31
      %p33 = scmp.ne.s32.totalorder %s22, %s25
      %p34 = scmp.eq.s32.totalorder %s17, 1
      %p35 = por %p33, %p34
      %p36 = scmp.ne.s32.totalorder %s25, %s26
      %p37 = scmp.eq.s32.totalorder %s17, 0
      %p38 = por %p36, %p37
      %p39 = scmp.ne.s32.totalorder %s25, %s26
      %p40 = scmp.eq.s32.totalorder %s18, 1
      %p41 = por %p39, %p40
      %p43 = scmp.ne.s32.totalorder %s26, %s42
      %p44 = scmp.eq.s32.totalorder %s18, 0
      %p45 = por %p43, %p44
      %s47 = sadd.s32 %s46, 1
      %p50 = scmp.eq.s32.totalorder %s12, 1
      %p51 = scmp.ne.s32.totalorder %s46, %s48
      %p52 = scmp.eq.s32.totalorder %s12, 0
      %p53 = por %p51, %p52
      %p54 = scmp.ne.s32.totalorder %s46, %s48
      %p55 = scmp.eq.s32.totalorder %s17, 1
      %p56 = por %p54, %p55
      %p57 = scmp.ne.s32.totalorder %s48, %s49
      %p58 = scmp.eq.s32.totalorder %s17, 0
      %p59 = por %p57, %p58
      %p60 = scmp.ne.s32.totalorder %s48, %s49
      %p61 = scmp.eq.s32.totalorder %s18, 1
      %p62 = por %p60, %p61
      %p64 = scmp.ne.s32.totalorder %s49, %s63
      %p65 = scmp.eq.s32.totalorder %s18, 0
      %p66 = por %p64, %p65
      %s68 = sadd.s32 %s67, 1
      %p71 = scmp.eq.s32.totalorder %s12, 1
      %p72 = scmp.ne.s32.totalorder %s67, %s69
      %p73 = scmp.eq.s32.totalorder %s12, 0
      %p74 = por %p72, %p73
      %p75 = scmp.ne.s32.totalorder %s67, %s69
      %p76 = scmp.eq.s32.totalorder %s17, 1
      %p77 = por %p75, %p76
      %p78 = scmp.ne.s32.totalorder %s69, %s70
      %p79 = scmp.eq.s32.totalorder %s17, 0
      %p80 = por %p78, %p79
      %p81 = scmp.ne.s32.totalorder %s69, %s70
      %p82 = scmp.eq.s32.totalorder %s18, 1
      %p83 = por %p81, %p82
      %p85 = scmp.ne.s32.totalorder %s70, %s84
      %p86 = scmp.eq.s32.totalorder %s18, 0
      %p87 = por %p85, %p86
      %s88 = ssub.s32 %s12, %s19
      %p89 = scmp.eq.s32.totalorder %s88, 0
      %s91 = sadd.s32 %s90, 1
      %s92 = scalar_select %p89, %s90, %s91
      %p95 = pneg %p89
      %p96 = scmp.eq.s32.totalorder %s12, 1
      %p97 = por %p95, %p96
      %p98 = scmp.ne.s32.totalorder %s90, %s93
      %p99 = scmp.eq.s32.totalorder %s12, 0
      %p100 = por %p98, %p99
      %p101 = scmp.ne.s32.totalorder %s90, %s93
      %p102 = scmp.eq.s32.totalorder %s17, 1
      %p103 = por %p101, %p102
      %p104 = scmp.ne.s32.totalorder %s93, %s94
      %p105 = scmp.eq.s32.totalorder %s17, 0
      %p106 = por %p104, %p105
      %p107 = scmp.ne.s32.totalorder %s93, %s94
      %p108 = scmp.eq.s32.totalorder %s18, 1
      %p109 = por %p107, %p108
      %p111 = scmp.ne.s32.totalorder %s94, %s110
      %p112 = scmp.eq.s32.totalorder %s18, 0
      %p113 = por %p111, %p112
      %p114 = scmp.le.s32.totalorder 1, %s12
      %p115 = scmp.lt.s32.totalorder %s12, 3
      %p116 = pnand %p114, %p115
      %p117 = pneg %p116
      // Predicated region
      $region9: #{tpu_custom_call.1} parent=5 // pred_check
        _
      $region10: #{tpu_custom_call.1} parent=5 // pred_check_branch
        %119 = sbr.rel (%p116) target = $region12
      $region11: #{tpu_custom_call.1} parent=5 // pred_region
        %s120 = ssub.s32 %s12, 1
        // Predicated region
        $region13: #{tpu_custom_call.1} parent=11 // pred_check
          %p121 = pneg %p59
        $region14: #{tpu_custom_call.1} parent=11 // pred_check_branch
          %123 = sbr.rel (%p121) target = $region16
        $region15: #{tpu_custom_call.1} parent=11 // pred_region
          _
        $region16: #{tpu_custom_call.1} parent=11 // pred_fallthru
          _
        // Predicated region
        $region17: #{tpu_custom_call.1} parent=11 // pred_check
          %p124 = pneg %p80
        $region18: #{tpu_custom_call.1} parent=11 // pred_check_branch
          %126 = sbr.rel (%p124) target = $region20
        $region19: #{tpu_custom_call.1} parent=11 // pred_region
          _
        $region20: #{tpu_custom_call.1} parent=11 // pred_fallthru
          _
      $region12: #{tpu_custom_call.1} parent=5 // pred_fallthru
        _
      %p127 = scmp.lt.s32.totalorder %s12, 2
      // Predicated region
      $region21: #{tpu_custom_call.1} parent=5 // pred_check
        %p128 = pneg %p127
      $region22: #{tpu_custom_call.1} parent=5 // pred_check_branch
        %130 = sbr.rel (%p128) target = $region24
      $region23: #{tpu_custom_call.1} parent=5 // pred_region
        // Predicated region
        $region25: #{tpu_custom_call.1} parent=23 // pred_check
          %p131 = pneg %p32
        $region26: #{tpu_custom_call.1} parent=23 // pred_check_branch
          %133 = sbr.rel (%p131) target = $region28
        $region27: #{tpu_custom_call.1} parent=23 // pred_region
          %p134 = scmp.lt.s32.totalorder %s12, 1
          %s135 = scalar_select %p134, %s12, 1
          %s136 = smul.addr %s135, 4
          %s137 = scalar_lea.vmem %s0, %s136
        $region28: #{tpu_custom_call.1} parent=23 // pred_fallthru
          _
      $region24: #{tpu_custom_call.1} parent=5 // pred_fallthru
        _
      %p138 = scmp.le.s32.totalorder 1, %s12
      %p139 = scmp.lt.s32.totalorder %s12, 3
      %p140 = pnand %p138, %p139
      %p141 = pneg %p140
      // Predicated region
      $region29: #{tpu_custom_call.1} parent=5 // pred_check
        _
      $region30: #{tpu_custom_call.1} parent=5 // pred_check_branch
        %143 = sbr.rel (%p140) target = $region32
      $region31: #{tpu_custom_call.1} parent=5 // pred_region
        %s144 = ssub.s32 %s12, 1
        %p145 = scmp.lt.s32.totalorder %s17, 1
        %s146 = scalar_select %p145, %s17, 1
        %s147 = smul.addr %s146, 4
        %s148 = scalar_lea.vmem %s0, %s147
        %p149 = pneg %p38
        %p150 = pneg %p35
        %p151 = pneg %p59
        %p152 = pneg %p56
        %p153 = pneg %p80
        %p154 = pneg %p77
        %p155 = pneg %p106
        %p156 = pneg %p103
        %s157 = sand.u32 %s93, 1
        %s158 = scalar_lea.sflag [#allocation3], %s157
        %s159 = sand.u32 %s93, 1
        %s160 = smul.addr %s159, 4
        %s161 = scalar_lea.vmem [#allocation2], %s160
        %p162 = scmp.lt.s32.totalorder %s17, 1
        %s163 = scalar_select %p162, %s17, 1
        %s164 = smul.addr %s163, 4
        %s165 = scalar_lea.vmem %s0, %s164
        %v167 = vld [vmem:[%s165] sm:$0xf]
        %v168 = vld [vmem:[%s1] sm:$0xf]
        %v169 = vld [vmem:[%s1 + $0x4] sm:$0xf]
        %v170 = vld [vmem:[%s1 + $0x8] sm:$0xf]
        %v171 = vld [vmem:[%s1 + $0xc] sm:$0xf]
        %v172 = vld [vmem:[%s2] sm:$0x1]
        %v174 = vperm.slane %v172, 0
        %v180 = vunpack.c.l.b16 %v168
        %v181 = vunpack.c.l.b16 %v169
        %v182 = vunpack.c.l.b16 %v170
        %v183 = vunpack.c.l.b16 %v171
        %v184 = vpack.c.b16 %v181, %v180
        %v185 = vpack.c.b16 %v183, %v182
        %vm188 = vcmask 261120
        %v190 = vsel %vm188, %v167, 0
        %192 = vmatpush.bf16.msra.mxu0 0
        %193 = vmatpush.bf16.msra.mxu0 0
        %194 = vmatpush.bf16.msra.mxu0 0
        %195 = vmatpush.bf16.msra.mxu0 0
        %196 = vmatpush.bf16.msra.mxu0 0
        %197 = vmatpush.bf16.msra.mxu0 0
        %198 = vmatpush.bf16.msra.mxu0 %v185
        %199 = vmatpush.bf16.msra.mxu0 %v184
        %200 = vmatmul.bf16.gmra.mxu0 %v190
        %v201 = vpop.f32.mrf.mxu0
        %v202 = vadd.f32 %v174, %v201
        %v203 = vpop.f32.mrf.mxu0
        %204 = vdwg.mxu0
        %v205 = vpack.c.bf16 %v202, %v202
        %vm206 = vcmask 125952
        %207 = vst.msk [vmem:[%s161] sm:$0xf] %vm206, %v205
        %s208 = sand.u32 %s93, 1
        %s209 = scalar_lea.sflag [#allocation3], %s208
        %s210 = sand.u32 %s93, 1
        %s211 = smul.addr %s210, 4
        %s212 = scalar_lea.vmem [#allocation2], %s211
        // Predicated region
        $region33: #{tpu_custom_call.1} parent=31 // pred_check
          %p213 = pneg %p103
        $region34: #{tpu_custom_call.1} parent=31 // pred_check_branch
          %215 = sbr.rel (%p213) target = $region36
        $region35: #{tpu_custom_call.1} parent=31 // pred_region
          %217 = vsyncadd %s209, 0
          %s218 = smul.addr %s17, 4
          %s219 = scalar_lea.hbm %s3, %s218
          %s221 = sshll.u32 %s212, 4
          %s222 = int_to_ptr.vmem [resolvable:$true] %s221
          %s223 = sshll.u32 %s219, 4
          %s224 = int_to_ptr.hbm [resolvable:$true] %s223
          %226 = dma.vmem_to_hbm [thread:$0]  %s222, 64, %s224, %s209
        $region36: #{tpu_custom_call.1} parent=31 // pred_fallthru
          _
      $region32: #{tpu_custom_call.1} parent=5 // pred_fallthru
        _
      %p227 = scmp.le.s32.totalorder 2, %s12
      // Predicated region
      $region37: #{tpu_custom_call.1} parent=5 // pred_check
        %p228 = pneg %p227
      $region38: #{tpu_custom_call.1} parent=5 // pred_check_branch
        %230 = sbr.rel (%p228) target = $region40
      $region39: #{tpu_custom_call.1} parent=5 // pred_region
        %s231 = ssub.s32 %s12, 2
        // Predicated region
        $region41: #{tpu_custom_call.1} parent=39 // pred_check
          %p232 = pneg %p109
        $region42: #{tpu_custom_call.1} parent=39 // pred_check_branch
          %234 = sbr.rel (%p232) target = $region44
        $region43: #{tpu_custom_call.1} parent=39 // pred_region
          %s235 = sand.u32 %s94, 1
          %s236 = scalar_lea.sflag [#allocation3], %s235
          %s237 = sand.u32 %s94, 1
          %s238 = smul.addr %s237, 4
          %s239 = scalar_lea.vmem [#allocation2], %s238
          %241 = dma.done %s236, 64
        $region44: #{tpu_custom_call.1} parent=39 // pred_fallthru
          _
      $region40: #{tpu_custom_call.1} parent=5 // pred_fallthru
        _
    $region6: #{tpu_custom_call.1} parent=1 // loop_footer
      %s16 = sadd.s32 1, %s12
    $region7: #{tpu_custom_call.1} parent=1 // loop_footer_branch
      %11 = sbr.rel target = $region3
    $region8: #{tpu_custom_call.1} parent=1 // loop_exit
      _
    %242 = vsyncpa [#allocation3], 1
    %s243 = scalar_lea.sflag [#allocation3], 1
    %244 = vsyncpa %s243, 1

</llo_original>
